<compile_context>
chip_gen: v7x
topology: tpu7x:2x2x1
jax: 0.10.0
libtpu: 0.0.40
codegen_flags: <defaults>
</compile_context>

<pallas_src>
import functools

import jax
import jax.numpy as jnp
import numpy as np
from jax.experimental import pallas as pl
from jax.experimental.pallas import tpu as pltpu

_NSEM = 8                          # DMA semaphores, shared round-robin per step
_VMEM_BUDGET = 12 * 1024 * 1024    # keep under v5e's 16 MiB default scoped VMEM
_OUT_TILE_BUDGET = 8 * 1024 * 1024  # budget for the double-buffered output tile


def _round_up(x, m):
    return ((x + m - 1) // m) * m


def _dma_gather_kernel(ids_ref, table_hbm, o_ref, sem, *, K, N):
    """Gather K table rows from HBM directly into the pipelined (K, E) output tile."""
    base = pl.program_id(0) * K
    nvalid = jnp.minimum(N - base, K)  # skip padded tail slots on the last step

    # Issue all row DMAs first so they are all in flight concurrently
    # (each 1-row transfer is latency-bound, not bandwidth-bound).
    @pl.loop(0, nvalid)
    def _start(j):
        row = ids_ref[base + j]
        pltpu.make_async_copy(
            table_hbm.at[pl.ds(row, 1), :],
            o_ref.at[pl.ds(j, 1), :],
            sem.at[j % _NSEM],
        ).start()

    # Wait on every issued copy before the step ends (only the destination,
    # semaphore and transfer size matter for the wait descriptor; all copies
    # are the same size, so sharing semaphores round-robin is safe).
    @pl.loop(0, nvalid)
    def _wait(j):
        pltpu.make_async_copy(
            table_hbm.at[pl.ds(0, 1), :],
            o_ref.at[pl.ds(j, 1), :],
            sem.at[j % _NSEM],
        ).wait()


def _resident_kernel(ids_ref, table_ref, o_ref, *, K, N):
    """Small-vocab fast path: table lives in VMEM (fetched once), gather on-chip."""
    base = pl.program_id(0) * K
    nvalid = jnp.minimum(N - base, K)

    @pl.loop(0, nvalid)
    def _gather(j):
        row = ids_ref[base + j]
        o_ref[pl.ds(j, 1), :] = table_ref[pl.ds(row, 1), :]


def embedder(x, table, *, tokens_per_step=256, mode="auto"):
    """x: (B, S) integer token ids; table: (V, E) float. Returns (B, S, E)."""
    B, S = x.shape
    V, E = table.shape
    N = B * S
    itemsize = jnp.dtype(table.dtype).itemsize

    # Clamp ids (jnp.take semantics for bad ids) and flatten the token axis.
    ids = jnp.clip(x.reshape(N).astype(jnp.int32), 0, V - 1)

    # Tokens per grid step: large enough to amortize per-step pipeline
    # overhead, capped so the double-buffered (K, E) output tile fits the
    # VMEM budget on every TPU generation (incl. v7x's smaller VMEM).
    max_k = max(8, (_OUT_TILE_BUDGET // (2 * E * itemsize)) // 8 * 8)
    K = max(8, min(_round_up(tokens_per_step, 8), _round_up(N, 8), max_k))
    n_steps = pl.cdiv(N, K)
    N_pad = n_steps * K

    table_bytes = V * E * itemsize
    if mode == "auto":
        # Resident path only if (conservatively double-buffered) table plus the
        # double-buffered output tile fit comfortably in scoped VMEM.
        mode = "resident" if (2 * table_bytes + 2 * K * E * itemsize) <= _VMEM_BUDGET else "dma"

    if mode == "resident":
        kernel = functools.partial(_resident_kernel, K=K, N=N)
        # Full table, constant block index -> DMA'd once and kept resident.
        in_specs = [pl.BlockSpec((V, E), lambda i, ids_ref: (0, 0))]
        scratch_shapes = []
    else:
        kernel = functools.partial(_dma_gather_kernel, K=K, N=N)
        # Table stays in HBM; the kernel gathers rows with manual DMAs.
        in_specs = [pl.BlockSpec(memory_space=pl.ANY)]
        scratch_shapes = [pltpu.SemaphoreType.DMA((_NSEM,))]

    cost = pl.CostEstimate(
        flops=0,
        transcendentals=0,
        bytes_accessed=2 * N * E * itemsize + N * 4,
    )

    out_flat = pl.pallas_call(
        kernel,
        out_shape=jax.ShapeDtypeStruct((N_pad, E), table.dtype),
        grid_spec=pltpu.PrefetchScalarGridSpec(
            num_scalar_prefetch=1,          # ids land in SMEM, feed the kernel
            grid=(n_steps,),
            in_specs=in_specs,
            out_specs=pl.BlockSpec((K, E), lambda i, ids_ref: (i, 0)),
            scratch_shapes=scratch_shapes,
        ),
        compiler_params=pltpu.CompilerParams(
            dimension_semantics=("parallel",),   # v7x: shard token steps over 2 TCs
        ),
        cost_estimate=cost,
    )(ids, table)

    return out_flat[:N].reshape(B, S, E)


if __name__ == "__main__":
    # Small shapes consistent with the module's forward: Embedder(vocab, emb_dim)
    vocab_size = 64
    emb_dim = 128
    batch, seq = 2, 8

    key = jax.random.PRNGKey(0)
    k_ids, k_emb = jax.random.split(key)

    # nn.Embedding initializes weights ~ N(0, 1); do the same deterministically.
    table = jax.random.normal(k_emb, (vocab_size, emb_dim), dtype=jnp.float32)
    x = jax.random.randint(k_ids, (batch, seq), 0, vocab_size, dtype=jnp.int32)

    ref = jnp.take(table, x, axis=0)

    # Exercise both paths (resident-table on-chip gather and manual HBM DMA gather).
    for m in ("resident", "dma"):
        out = jax.block_until_ready(embedder(x, table, mode=m))
        assert out.shape == (batch, seq, emb_dim)
        np.testing.assert_allclose(np.asarray(out), np.asarray(ref), rtol=1e-6, atol=1e-6)

    # Multi-step + ragged-tail coverage (still small): 200 tokens, 64 per step.
    x2 = jax.random.randint(k_ids, (2, 100), 0, vocab_size, dtype=jnp.int32)
    ref2 = jnp.take(table, x2, axis=0)
    for m in ("resident", "dma"):
        out2 = jax.block_until_ready(embedder(x2, table, mode=m, tokens_per_step=64))
        np.testing.assert_allclose(np.asarray(out2), np.asarray(ref2), rtol=1e-6, atol=1e-6)

    print("KERNEL_OK")
</pallas_src>

<mosaic_0001>
module attributes {stable_mosaic.version = 11 : i64} {
  func.func @_resident_kernel(%arg0: i32, %arg1: memref<16xi32, #tpu.memory_space<smem>>, %arg2: memref<64x128xf32, #tpu.memory_space<vmem>>, %arg3: memref<16x128xf32, #tpu.memory_space<vmem>>) attributes {dimension_semantics = [#tpu.dimension_semantics<parallel>], iteration_bounds = array<i64: 1>, scalar_prefetch = 1 : i64, scratch_operands = 0 : i64, tpu.core_type = #tpu.core_type<tc>, window_params = [{pipeline_mode = #tpu.pipeline_mode<synchronous>, transform_indices = @transform_0, window_bounds = array<i64: 64, 128>}, {transform_indices = @transform_1, window_bounds = array<i64: 16, 128>}]} {
    %c16_i32 = arith.constant 16 : i32
    %0 = arith.muli %arg0, %c16_i32 : i32
    %c16_i32_0 = arith.constant 16 : i32
    %1 = arith.subi %c16_i32_0, %0 : i32
    %c16_i32_1 = arith.constant 16 : i32
    %2 = arith.minsi %1, %c16_i32_1 : i32
    %c0_i32 = arith.constant 0 : i32
    %3 = arith.subi %2, %c0_i32 : i32
    %c1_i32 = arith.constant 1 : i32
    %c1_i32_2 = arith.constant 1 : i32
    %4 = arith.subi %c1_i32, %c1_i32_2 : i32
    %5 = arith.addi %3, %4 : i32
    %c1_i32_3 = arith.constant 1 : i32
    %6 = arith.divsi %5, %c1_i32_3 : i32
    %c1_i32_4 = arith.constant 1 : i32
    %c0_i32_5 = arith.constant 0 : i32
    %c0_i32_6 = arith.constant 0 : i32
    %7 = arith.subi %6, %c0_i32_6 : i32
    %8 = arith.addi %c0_i32_6, %7 : i32
    %c1_i32_7 = arith.constant 1 : i32
    scf.for %arg4 = %c0_i32_6 to %8 step %c1_i32_7  : i32 {
      %9 = arith.muli %arg4, %c1_i32_4 : i32
      %10 = arith.addi %c0_i32_5, %9 : i32
      %11 = arith.addi %0, %10 : i32
      %12 = arith.index_cast %11 : i32 to index
      %13 = memref.load %arg1[%12] : memref<16xi32, #tpu.memory_space<smem>>
      %14 = arith.index_cast %13 : i32 to index
      %c0 = arith.constant 0 : index
      %15 = vector.load %arg2[%14, %c0] : memref<64x128xf32, #tpu.memory_space<vmem>>, vector<1x128xf32>
      %16 = arith.index_cast %10 : i32 to index
      %c0_8 = arith.constant 0 : index
      %17 = vector.load %arg3[%16, %c0_8] : memref<16x128xf32, #tpu.memory_space<vmem>>, vector<1x128xf32>
      tpu.vector_store %arg3[%16, %c0_8], %15 {strides = array<i32>} : memref<16x128xf32, #tpu.memory_space<vmem>>, vector<1x128xf32>,
    }
    return
  }
  func.func @transform_0(%arg0: i32, %arg1: memref<16xi32, #tpu.memory_space<smem>>) -> (i32, i32) {
    %c0_i32 = arith.constant 0 : i32
    %c0_i32_0 = arith.constant 0 : i32
    %c0_i32_1 = arith.constant 0 : i32
    return %c0_i32, %c0_i32_0 : i32, i32
  }
  func.func @transform_1(%arg0: i32, %arg1: memref<16xi32, #tpu.memory_space<smem>>) -> (i32, i32) {
    %c0_i32 = arith.constant 0 : i32
    %c0_i32_0 = arith.constant 0 : i32
    return %arg0, %c0_i32 : i32, i32
  }
}

</mosaic_0001>

<llo_original>
// kernel: tpu_custom_call.1
$region0: #{tpu_custom_call.1}
  #allocation0 [shape = 'u32[]', space=smem, size = 0x4, offset = 0x4, fixed_abs, tag = 'smem constant byte address 0x4 - core index']
  #allocation1 [shape = 'u32[144,128]{1,0:T(1,128)}', space=vmem, size = 0x12000, scoped, tag = 'internal scratch']
  #allocation2 [shape = 's32[1]{0}', space=sflag, size = 0x4, scoped, tag = 'scoped memory for tpu_custom_call.1']
  #allocation3 [shape = 'u8[512]{0}', space=smem, size = 0x200, scoped, tag = 'prefetched SMEM operand 0']
  %s0 = inlined_call_operand.hbm [shape: s32[16], index: 0, kind: input, shape index: {}]
  %s1 = inlined_call_operand.hbm [shape: f32[64,128], index: 1, kind: input, shape index: {}]
  %s2 = inlined_call_operand.hbm [shape: f32[16,128], index: 2, kind: output, shape index: {}]
  %s3 = sld [smem:[#allocation0]]
  $region25: #{tpu_custom_call.1} parent=0
    _
  %s5 = ssub.s32 1, %s3
  %s6 = scalar_select 0, %s5, %s3
  %8 = dma.hbm_to_smem %s0, 16, [#allocation3], [#allocation2]
  %9 = dma.done [#allocation2], 16
  %10 = sfence
  $region1: #{tpu_custom_call.1} parent=0
    #allocation4 [shape = 'u8[32768]{0}', space=vmem, size = 0x8000, scoped, tag = 'input window, operand 1, single buffered']
    #allocation5 [shape = 's32[1]{0}', space=sflag, size = 0x4, scoped, tag = 'scoped memory for tpu_custom_call.1']
    #allocation6 [shape = 's32[1]{0}', space=sflag, size = 0x4, scoped, tag = 'scoped memory for tpu_custom_call.1']
    #allocation7 [shape = 'u8[8192]{0}', space=vmem, size = 0x2000, scoped, tag = 'output window, operand 0, single buffered']
    %11 = vsyncpa [#allocation5], 0
    %12 = vsyncpa [#allocation6], 0
    // Predicated region
    $region2: #{tpu_custom_call.1} parent=1 // pred_check
      _
    $region3: #{tpu_custom_call.1} parent=1 // pred_check_branch
      %14 = sbr.rel (0) target = $region5
    $region4: #{tpu_custom_call.1} parent=1 // pred_region
      %s16 = ssub.s32 1024, 1024
      %17 = vsyncadd [#allocation5], %s16
      %s18 = sshll.u32 [#allocation4], 4
      %s19 = int_to_ptr.vmem [resolvable:$true] %s18
      %24 = dma.hbm_to_vmem [thread:$0]  %s1, 1024, %s19, [#allocation5], 128, 128, 8
    $region5: #{tpu_custom_call.1} parent=1 // pred_fallthru
      _
    // Predicated region
    $region6: #{tpu_custom_call.1} parent=1 // pred_check
      _
    $region7: #{tpu_custom_call.1} parent=1 // pred_check_branch
      %26 = sbr.rel (0) target = $region9
    $region8: #{tpu_custom_call.1} parent=1 // pred_region
      %27 = dma.done [#allocation5], 1024
    $region9: #{tpu_custom_call.1} parent=1 // pred_fallthru
      _
    %s28 = smul.u32 0, 16
    %s29 = ssub.s32 16, %s28
    %p30 = scmp.lt.s32.totalorder %s29, 16
    %s31 = scalar_select %p30, %s29, 16
    // While loop
    $region10: #{tpu_custom_call.1} parent=1 // loop_pre_header
      _
    $region11: #{tpu_custom_call.1} parent=1 // loop_header
      %s33 = sphi 0, %s35
      %p34 = scmp.ge.s32.totalorder %s33, %s31
    $region12: #{tpu_custom_call.1} parent=1 // loop_header_branch
      %37 = sbr.rel (%p34) target = $region16
    $region13: #{tpu_custom_call.1} parent=1 // loop_body
      %s38 = sadd.s32 %s28, %s33
      %s39 = sld [smem:[#allocation3 + %s38]]
      %s40 = scalar_lea.vmem [#allocation4], %s39
      %v41 = vld [vmem:[%s40] sm:$0x1]
      %s42 = scalar_lea.vmem [#allocation7], %s33
      %43 = vst [vmem:[%s42] sm:$0x1] %v41
    $region14: #{tpu_custom_call.1} parent=1 // loop_footer
      %s35 = sadd.s32 %s33, 1
    $region15: #{tpu_custom_call.1} parent=1 // loop_footer_branch
      %32 = sbr.rel target = $region11
    $region16: #{tpu_custom_call.1} parent=1 // loop_exit
      _
    // Predicated region
    $region17: #{tpu_custom_call.1} parent=1 // pred_check
      _
    $region18: #{tpu_custom_call.1} parent=1 // pred_check_branch
      %45 = sbr.rel (0) target = $region20
    $region19: #{tpu_custom_call.1} parent=1 // pred_region
      %s47 = ssub.s32 256, 256
      %48 = vsyncadd [#allocation6], %s47
      %s49 = sshll.u32 [#allocation7], 4
      %s50 = int_to_ptr.vmem [resolvable:$true] %s49
      %55 = dma.vmem_to_hbm [thread:$0]  %s50, 256, %s2, [#allocation6], 128, 128, 8
    $region20: #{tpu_custom_call.1} parent=1 // pred_fallthru
      _
    // Predicated region
    $region21: #{tpu_custom_call.1} parent=1 // pred_check
      _
    $region22: #{tpu_custom_call.1} parent=1 // pred_check_branch
      %57 = sbr.rel (0) target = $region24
    $region23: #{tpu_custom_call.1} parent=1 // pred_region
      %58 = dma.done [#allocation6], 256
    $region24: #{tpu_custom_call.1} parent=1 // pred_fallthru
      _
    %59 = vsyncpa [#allocation5], 1
    %60 = vsyncpa [#allocation6], 1

</llo_original>
